<compile_context>
chip_gen: v5e
topology: v5e:2x2
jax: 0.10.0
libtpu: 0.0.40
codegen_flags: <defaults>
</compile_context>

<pallas_src>
import jax
import jax.numpy as jnp
from jax.experimental import pallas as pl
from jax.experimental.pallas import tpu as pltpu

# ----------------------------- hyperparameters -----------------------------
VOCAB = 50
EMB = 32            # embedding_dim
HID = 32            # hidden_dim (unidirectional, num_layers=1 -> lstm_output_dim = HID)
NUM_CLASSES = 10
SEQ = 8

_VMEM = pl.BlockSpec(memory_space=pltpu.MemorySpace.VMEM)

# Slab layout (rows, all sections 8-row aligned, 128 lanes wide, f32):
#   [  0: 56) emb_proj  (V=50 used)   = emb_table @ W_ih^T + b, g-cols *2
#   [ 56: 88) whh_t     (32,128)      = W_hh^T, g-cols *2
#   [ 88:120) w1t       (32,128)
#   [120:128) b1        (row 120)
#   [128:256) w2t       (128, 64 used)
#   [256:264) b2        (row 256, 64 used)
#   [264:328) w3t       (64, 10 used)
#   [328:336) b3        (row 328, 10 used)
_SLAB_ROWS = 336


# ------------------------------- fused kernel -------------------------------
def _fused_kernel(x_ref, slab_ref, out_ref):
    """Embedding gather + single-layer LSTM + MLP head, fully fused in VMEM."""
    S, H, V, C = SEQ, HID, VOCAB, NUM_CLASSES

    # 1) Embedding gather fused with the input projection (+bias): a single
    #    (S,V)@(V,4H) one-hot MXU matmul.  g-gate columns already scaled by 2.
    ids = x_ref[...]                                              # (S, 1) int32
    cols = jax.lax.broadcasted_iota(jnp.int32, (S, V), 1)
    onehot = (cols == ids).astype(jnp.float32)                    # (S, V)
    gates_x = jnp.dot(onehot, slab_ref[0:V, :],
                      preferred_element_type=jnp.float32)         # (S, 4H)

    # 2) Recurrence, fully unrolled.  Gate lane layout [i | f | o | g]:
    #    one sigmoid over all 128 lanes per step; tanh(g) recovered as
    #    2*sigmoid(2g)-1 on the VALU.
    whh_t = slab_ref[56:88, :]                                    # (H, 4H)
    h = jnp.zeros((1, H), jnp.float32)
    c = jnp.zeros((1, H), jnp.float32)
    hs = []
    for t in range(S):
        gates = gates_x[t:t + 1, :] + jnp.dot(
            h, whh_t, preferred_element_type=jnp.float32)         # (1, 4H)
        s = jax.nn.sigmoid(gates)                                 # 1 EUP push
        i_g = s[:, 0 * H:1 * H]
        f_g = s[:, 1 * H:2 * H]
        o_g = s[:, 2 * H:3 * H]
        g_g = 2.0 * s[:, 3 * H:4 * H] - 1.0                       # == tanh(g)
        c = f_g * c + i_g * g_g
        h = o_g * jnp.tanh(c)
        hs.append(h)
    o = jnp.concatenate(hs, axis=0)                               # (S, H), vregs

    # 3) MLP head (dropout == identity in eval):
    #    dense1 -> relu -> dense2 -> relu -> classifier.
    w1t = slab_ref[88:120, :]
    b1 = slab_ref[120:121, :]
    w2t = slab_ref[128:256, 0:64]
    b2 = slab_ref[256:257, 0:64]
    w3t = slab_ref[264:328, 0:C]
    b3 = slab_ref[328:329, 0:C]

    h1 = jnp.maximum(
        jnp.dot(o, w1t, preferred_element_type=jnp.float32) + b1, 0.0)   # (S,128)
    h2 = jnp.maximum(
        jnp.dot(h1, w2t, preferred_element_type=jnp.float32) + b2, 0.0)  # (S,64)
    out_ref[...] = (
        jnp.dot(h2, w3t, preferred_element_type=jnp.float32) + b3)       # (S,C)


# ------------------------------ params & prep -------------------------------
def init_params(key):
    ks = jax.random.split(key, 12)

    def u(k, shape, fan):
        bound = 1.0 / jnp.sqrt(fan)
        return jax.random.uniform(k, shape, jnp.float32, -bound, bound)

    return {
        "emb_table": jax.random.normal(ks[0], (VOCAB, EMB), jnp.float32) * 0.1,
        # LSTM weights, PyTorch layout (4H, in) / (4H, H), gate order i,f,g,o;
        # b_ih + b_hh folded into one bias.
        "w_ih": u(ks[1], (4 * HID, EMB), HID),
        "w_hh": u(ks[2], (4 * HID, HID), HID),
        "b_lstm": u(ks[3], (4 * HID,), HID) + u(ks[4], (4 * HID,), HID),
        # dense1: HID -> 128, dense2: 128 -> 64, classifier: 64 -> NUM_CLASSES
        "w1": u(ks[5], (128, HID), HID), "b1": u(ks[6], (128,), HID),
        "w2": u(ks[7], (64, 128), 128), "b2": u(ks[8], (64,), 128),
        "w3": u(ks[9], (NUM_CLASSES, 64), 64), "b3": u(ks[10], (NUM_CLASSES,), 64),
    }


def _reorder_gates(w):
    # PyTorch gate chunk order [i, f, g, o] along dim 0  ->  [i, f, o, g]
    i, f, g, o = jnp.split(w, 4, axis=0)
    return jnp.concatenate([i, f, o, g], axis=0)


def _pad_to(a, rows, lanes=128):
    r, c = a.shape
    return jnp.pad(a, ((0, rows - r), (0, lanes - c)))


def prepare_kernel_params(params):
    """One-time (outside jit) layout prep: gate reorder, emb x W_ih (+bias)
    pre-fusion, g-gate x2 pre-scale for the sigmoid/tanh trick, transposes,
    and packing everything into one 128-lane-wide slab."""
    H = HID
    wih = _reorder_gates(params["w_ih"])            # (4H, E)
    whh = _reorder_gates(params["w_hh"])            # (4H, H)
    b = _reorder_gates(params["b_lstm"])            # (4H,)

    # Fused embedding-projection table (bias folded; exact since one-hot rows
    # sum to 1), then scale g-gate columns by 2 (tanh(x) = 2*sigmoid(2x) - 1).
    emb_proj = params["emb_table"] @ wih.T + b      # (V, 4H)
    whh_t = whh.T                                   # (H, 4H)
    g_scale = jnp.concatenate(
        [jnp.ones((3 * H,), jnp.float32), jnp.full((H,), 2.0, jnp.float32)])
    emb_proj = emb_proj * g_scale
    whh_t = whh_t * g_scale

    slab = jnp.concatenate([
        _pad_to(emb_proj, 56),                       # rows   0: 56 (50 used)
        _pad_to(whh_t, 32),                          # rows  56: 88
        _pad_to(params["w1"].T, 32),                 # rows  88:120
        _pad_to(params["b1"].reshape(1, -1), 8),     # rows 120:128
        _pad_to(params["w2"].T, 128),                # rows 128:256
        _pad_to(params["b2"].reshape(1, -1), 8),     # rows 256:264
        _pad_to(params["w3"].T, 64),                 # rows 264:328
        _pad_to(params["b3"].reshape(1, -1), 8),     # rows 328:336
    ], axis=0).astype(jnp.float32)
    assert slab.shape == (_SLAB_ROWS, 128)
    return {"slab": slab}


# ------------------------------ forward (jit) -------------------------------
@jax.jit
def forward(kparams, x):
    x2d = x.reshape(SEQ, 1).astype(jnp.int32)
    return pl.pallas_call(
        _fused_kernel,
        out_shape=jax.ShapeDtypeStruct((SEQ, NUM_CLASSES), jnp.float32),
        in_specs=[_VMEM, _VMEM],
        out_specs=_VMEM,
    )(x2d, kparams["slab"])


# ------------------------------ pure-JAX reference ---------------------------
def forward_ref(params, x):
    """Pure-JAX reference matching PyTorch LSTM (gate order i,f,g,o) + MLP."""
    emb = jnp.take(params["emb_table"], x, axis=0)
    H = HID
    wih_t, whh_t, b = params["w_ih"].T, params["w_hh"].T, params["b_lstm"]

    def step(carry, xt):
        h, c = carry
        gates = xt @ wih_t + h @ whh_t + b
        i = jax.nn.sigmoid(gates[0 * H:1 * H])
        f = jax.nn.sigmoid(gates[1 * H:2 * H])
        g = jnp.tanh(gates[2 * H:3 * H])
        og = jax.nn.sigmoid(gates[3 * H:4 * H])
        c_new = f * c + i * g
        h_new = og * jnp.tanh(c_new)
        return (h_new, c_new), h_new

    (_, _), o = jax.lax.scan(step, (jnp.zeros(H), jnp.zeros(H)), emb)
    h1 = jnp.maximum(o @ params["w1"].T + params["b1"], 0.0)
    h2 = jnp.maximum(h1 @ params["w2"].T + params["b2"], 0.0)
    return h2 @ params["w3"].T + params["b3"]


if __name__ == "__main__":
    key = jax.random.PRNGKey(0)
    pkey, xkey = jax.random.split(key)
    params = init_params(pkey)
    kparams = prepare_kernel_params(params)          # one-time layout prep
    x = jax.random.randint(xkey, (SEQ,), 0, VOCAB, dtype=jnp.int32)
    # `casing` / `pos` inputs are only consumed on the CRF branch (crf=False here).
    # TODO(synk): CRF branch (crf_linear + log_softmax + CRF.decode) not implemented.

    out = forward(kparams, x)
    jax.block_until_ready(out)

    ref = forward_ref(params, x)
    assert out.shape == (SEQ, NUM_CLASSES)
    assert jnp.allclose(out, ref, atol=1e-4, rtol=1e-4), "mismatch vs reference"
    print("KERNEL_OK")
</pallas_src>

<mosaic_0001>
module attributes {stable_mosaic.version = 11 : i64} {
  func.func @_fused_kernel(%arg0: memref<8x1xi32, #tpu.memory_space<vmem>>, %arg1: memref<336x128xf32, #tpu.memory_space<vmem>>, %arg2: memref<8x10xf32, #tpu.memory_space<vmem>>) attributes {dimension_semantics = [], scalar_prefetch = 0 : i64, scratch_operands = 0 : i64, tpu.core_type = #tpu.core_type<tc>} {
    %c0 = arith.constant 0 : index
    %c0_0 = arith.constant 0 : index
    %0 = vector.load %arg0[%c0, %c0_0] : memref<8x1xi32, #tpu.memory_space<vmem>>, vector<8x1xi32>
    %1 = tpu.iota {dimensions = array<i32: 1>} : vector<8x50xi32>
    %2 = vector.broadcast %0 : vector<8x1xi32> to vector<8x50xi32>
    %3 = arith.cmpi eq, %1, %2 : vector<8x50xi32>
    %4 = arith.extui %3 : vector<8x50xi1> to vector<8x50xi32>
    %5 = arith.sitofp %4 : vector<8x50xi32> to vector<8x50xf32>
    %c0_1 = arith.constant 0 : index
    %c0_2 = arith.constant 0 : index
    %6 = vector.load %arg1[%c0_1, %c0_2] : memref<336x128xf32, #tpu.memory_space<vmem>>, vector<50x128xf32>
    %cst = arith.constant dense<0.000000e+00> : vector<8x128xf32>
    %7 = tpu.matmul %5, %6, %cst {dimension_numbers = #tpu.dot_dimension_numbers<[1], [0], [0], [1], [0, 0, 1, 1], [], []>} : vector<8x50xf32>, vector<50x128xf32>, vector<8x128xf32> -> vector<8x128xf32>
    %c56 = arith.constant 56 : index
    %c0_3 = arith.constant 0 : index
    %8 = vector.load %arg1[%c56, %c0_3] : memref<336x128xf32, #tpu.memory_space<vmem>>, vector<32x128xf32>
    %cst_4 = arith.constant 0.000000e+00 : f32
    %9 = vector.broadcast %cst_4 : f32 to vector<1x32xf32>
    %cst_5 = arith.constant 0.000000e+00 : f32
    %10 = vector.broadcast %cst_5 : f32 to vector<1x32xf32>
    %11 = vector.extract_strided_slice %7 {offsets = [0, 0], sizes = [1, 128], strides = [1, 1]} : vector<8x128xf32> to vector<1x128xf32>
    %cst_6 = arith.constant dense<0.000000e+00> : vector<1x128xf32>
    %12 = tpu.matmul %9, %8, %cst_6 {dimension_numbers = #tpu.dot_dimension_numbers<[1], [0], [0], [1], [0, 0, 1, 1], [], []>} : vector<1x32xf32>, vector<32x128xf32>, vector<1x128xf32> -> vector<1x128xf32>
    %13 = arith.addf %11, %12 : vector<1x128xf32>
    %14 = arith.negf %13 : vector<1x128xf32>
    %15 = math.exp %14 : vector<1x128xf32>
    %cst_7 = arith.constant 1.000000e+00 : f32
    %16 = vector.broadcast %cst_7 : f32 to vector<1x128xf32>
    %17 = arith.addf %16, %15 : vector<1x128xf32>
    %18 = arith.divf %16, %17 : vector<1x128xf32>
    %19 = vector.extract_strided_slice %18 {offsets = [0, 0], sizes = [1, 32], strides = [1, 1]} : vector<1x128xf32> to vector<1x32xf32>
    %20 = vector.extract_strided_slice %18 {offsets = [0, 32], sizes = [1, 32], strides = [1, 1]} : vector<1x128xf32> to vector<1x32xf32>
    %21 = vector.extract_strided_slice %18 {offsets = [0, 64], sizes = [1, 32], strides = [1, 1]} : vector<1x128xf32> to vector<1x32xf32>
    %22 = vector.extract_strided_slice %18 {offsets = [0, 96], sizes = [1, 32], strides = [1, 1]} : vector<1x128xf32> to vector<1x32xf32>
    %cst_8 = arith.constant 2.000000e+00 : f32
    %23 = vector.broadcast %cst_8 : f32 to vector<1x32xf32>
    %24 = arith.mulf %23, %22 : vector<1x32xf32>
    %cst_9 = arith.constant 1.000000e+00 : f32
    %25 = vector.broadcast %cst_9 : f32 to vector<1x32xf32>
    %26 = arith.subf %24, %25 : vector<1x32xf32>
    %27 = arith.mulf %20, %10 : vector<1x32xf32>
    %28 = arith.mulf %19, %26 : vector<1x32xf32>
    %29 = arith.addf %27, %28 : vector<1x32xf32>
    %30 = math.tanh %29 : vector<1x32xf32>
    %31 = arith.mulf %21, %30 : vector<1x32xf32>
    %32 = vector.extract_strided_slice %7 {offsets = [1, 0], sizes = [1, 128], strides = [1, 1]} : vector<8x128xf32> to vector<1x128xf32>
    %cst_10 = arith.constant dense<0.000000e+00> : vector<1x128xf32>
    %33 = tpu.matmul %31, %8, %cst_10 {dimension_numbers = #tpu.dot_dimension_numbers<[1], [0], [0], [1], [0, 0, 1, 1], [], []>} : vector<1x32xf32>, vector<32x128xf32>, vector<1x128xf32> -> vector<1x128xf32>
    %34 = arith.addf %32, %33 : vector<1x128xf32>
    %35 = arith.negf %34 : vector<1x128xf32>
    %36 = math.exp %35 : vector<1x128xf32>
    %cst_11 = arith.constant 1.000000e+00 : f32
    %37 = vector.broadcast %cst_11 : f32 to vector<1x128xf32>
    %38 = arith.addf %37, %36 : vector<1x128xf32>
    %39 = arith.divf %37, %38 : vector<1x128xf32>
    %40 = vector.extract_strided_slice %39 {offsets = [0, 0], sizes = [1, 32], strides = [1, 1]} : vector<1x128xf32> to vector<1x32xf32>
    %41 = vector.extract_strided_slice %39 {offsets = [0, 32], sizes = [1, 32], strides = [1, 1]} : vector<1x128xf32> to vector<1x32xf32>
    %42 = vector.extract_strided_slice %39 {offsets = [0, 64], sizes = [1, 32], strides = [1, 1]} : vector<1x128xf32> to vector<1x32xf32>
    %43 = vector.extract_strided_slice %39 {offsets = [0, 96], sizes = [1, 32], strides = [1, 1]} : vector<1x128xf32> to vector<1x32xf32>
    %cst_12 = arith.constant 2.000000e+00 : f32
    %44 = vector.broadcast %cst_12 : f32 to vector<1x32xf32>
    %45 = arith.mulf %44, %43 : vector<1x32xf32>
    %cst_13 = arith.constant 1.000000e+00 : f32
    %46 = vector.broadcast %cst_13 : f32 to vector<1x32xf32>
    %47 = arith.subf %45, %46 : vector<1x32xf32>
    %48 = arith.mulf %41, %29 : vector<1x32xf32>
    %49 = arith.mulf %40, %47 : vector<1x32xf32>
    %50 = arith.addf %48, %49 : vector<1x32xf32>
    %51 = math.tanh %50 : vector<1x32xf32>
    %52 = arith.mulf %42, %51 : vector<1x32xf32>
    %53 = vector.extract_strided_slice %7 {offsets = [2, 0], sizes = [1, 128], strides = [1, 1]} : vector<8x128xf32> to vector<1x128xf32>
    %cst_14 = arith.constant dense<0.000000e+00> : vector<1x128xf32>
    %54 = tpu.matmul %52, %8, %cst_14 {dimension_numbers = #tpu.dot_dimension_numbers<[1], [0], [0], [1], [0, 0, 1, 1], [], []>} : vector<1x32xf32>, vector<32x128xf32>, vector<1x128xf32> -> vector<1x128xf32>
    %55 = arith.addf %53, %54 : vector<1x128xf32>
    %56 = arith.negf %55 : vector<1x128xf32>
    %57 = math.exp %56 : vector<1x128xf32>
    %cst_15 = arith.constant 1.000000e+00 : f32
    %58 = vector.broadcast %cst_15 : f32 to vector<1x128xf32>
    %59 = arith.addf %58, %57 : vector<1x128xf32>
    %60 = arith.divf %58, %59 : vector<1x128xf32>
    %61 = vector.extract_strided_slice %60 {offsets = [0, 0], sizes = [1, 32], strides = [1, 1]} : vector<1x128xf32> to vector<1x32xf32>
    %62 = vector.extract_strided_slice %60 {offsets = [0, 32], sizes = [1, 32], strides = [1, 1]} : vector<1x128xf32> to vector<1x32xf32>
    %63 = vector.extract_strided_slice %60 {offsets = [0, 64], sizes = [1, 32], strides = [1, 1]} : vector<1x128xf32> to vector<1x32xf32>
    %64 = vector.extract_strided_slice %60 {offsets = [0, 96], sizes = [1, 32], strides = [1, 1]} : vector<1x128xf32> to vector<1x32xf32>
    %cst_16 = arith.constant 2.000000e+00 : f32
    %65 = vector.broadcast %cst_16 : f32 to vector<1x32xf32>
    %66 = arith.mulf %65, %64 : vector<1x32xf32>
    %cst_17 = arith.constant 1.000000e+00 : f32
    %67 = vector.broadcast %cst_17 : f32 to vector<1x32xf32>
    %68 = arith.subf %66, %67 : vector<1x32xf32>
    %69 = arith.mulf %62, %50 : vector<1x32xf32>
    %70 = arith.mulf %61, %68 : vector<1x32xf32>
    %71 = arith.addf %69, %70 : vector<1x32xf32>
    %72 = math.tanh %71 : vector<1x32xf32>
    %73 = arith.mulf %63, %72 : vector<1x32xf32>
    %74 = vector.extract_strided_slice %7 {offsets = [3, 0], sizes = [1, 128], strides = [1, 1]} : vector<8x128xf32> to vector<1x128xf32>
    %cst_18 = arith.constant dense<0.000000e+00> : vector<1x128xf32>
    %75 = tpu.matmul %73, %8, %cst_18 {dimension_numbers = #tpu.dot_dimension_numbers<[1], [0], [0], [1], [0, 0, 1, 1], [], []>} : vector<1x32xf32>, vector<32x128xf32>, vector<1x128xf32> -> vector<1x128xf32>
    %76 = arith.addf %74, %75 : vector<1x128xf32>
    %77 = arith.negf %76 : vector<1x128xf32>
    %78 = math.exp %77 : vector<1x128xf32>
    %cst_19 = arith.constant 1.000000e+00 : f32
    %79 = vector.broadcast %cst_19 : f32 to vector<1x128xf32>
    %80 = arith.addf %79, %78 : vector<1x128xf32>
    %81 = arith.divf %79, %80 : vector<1x128xf32>
    %82 = vector.extract_strided_slice %81 {offsets = [0, 0], sizes = [1, 32], strides = [1, 1]} : vector<1x128xf32> to vector<1x32xf32>
    %83 = vector.extract_strided_slice %81 {offsets = [0, 32], sizes = [1, 32], strides = [1, 1]} : vector<1x128xf32> to vector<1x32xf32>
    %84 = vector.extract_strided_slice %81 {offsets = [0, 64], sizes = [1, 32], strides = [1, 1]} : vector<1x128xf32> to vector<1x32xf32>
    %85 = vector.extract_strided_slice %81 {offsets = [0, 96], sizes = [1, 32], strides = [1, 1]} : vector<1x128xf32> to vector<1x32xf32>
    %cst_20 = arith.constant 2.000000e+00 : f32
    %86 = vector.broadcast %cst_20 : f32 to vector<1x32xf32>
    %87 = arith.mulf %86, %85 : vector<1x32xf32>
    %cst_21 = arith.constant 1.000000e+00 : f32
    %88 = vector.broadcast %cst_21 : f32 to vector<1x32xf32>
    %89 = arith.subf %87, %88 : vector<1x32xf32>
    %90 = arith.mulf %83, %71 : vector<1x32xf32>
    %91 = arith.mulf %82, %89 : vector<1x32xf32>
    %92 = arith.addf %90, %91 : vector<1x32xf32>
    %93 = math.tanh %92 : vector<1x32xf32>
    %94 = arith.mulf %84, %93 : vector<1x32xf32>
    %95 = vector.extract_strided_slice %7 {offsets = [4, 0], sizes = [1, 128], strides = [1, 1]} : vector<8x128xf32> to vector<1x128xf32>
    %cst_22 = arith.constant dense<0.000000e+00> : vector<1x128xf32>
    %96 = tpu.matmul %94, %8, %cst_22 {dimension_numbers = #tpu.dot_dimension_numbers<[1], [0], [0], [1], [0, 0, 1, 1], [], []>} : vector<1x32xf32>, vector<32x128xf32>, vector<1x128xf32> -> vector<1x128xf32>
    %97 = arith.addf %95, %96 : vector<1x128xf32>
    %98 = arith.negf %97 : vector<1x128xf32>
    %99 = math.exp %98 : vector<1x128xf32>
    %cst_23 = arith.constant 1.000000e+00 : f32
    %100 = vector.broadcast %cst_23 : f32 to vector<1x128xf32>
    %101 = arith.addf %100, %99 : vector<1x128xf32>
    %102 = arith.divf %100, %101 : vector<1x128xf32>
    %103 = vector.extract_strided_slice %102 {offsets = [0, 0], sizes = [1, 32], strides = [1, 1]} : vector<1x128xf32> to vector<1x32xf32>
    %104 = vector.extract_strided_slice %102 {offsets = [0, 32], sizes = [1, 32], strides = [1, 1]} : vector<1x128xf32> to vector<1x32xf32>
    %105 = vector.extract_strided_slice %102 {offsets = [0, 64], sizes = [1, 32], strides = [1, 1]} : vector<1x128xf32> to vector<1x32xf32>
    %106 = vector.extract_strided_slice %102 {offsets = [0, 96], sizes = [1, 32], strides = [1, 1]} : vector<1x128xf32> to vector<1x32xf32>
    %cst_24 = arith.constant 2.000000e+00 : f32
    %107 = vector.broadcast %cst_24 : f32 to vector<1x32xf32>
    %108 = arith.mulf %107, %106 : vector<1x32xf32>
    %cst_25 = arith.constant 1.000000e+00 : f32
    %109 = vector.broadcast %cst_25 : f32 to vector<1x32xf32>
    %110 = arith.subf %108, %109 : vector<1x32xf32>
    %111 = arith.mulf %104, %92 : vector<1x32xf32>
    %112 = arith.mulf %103, %110 : vector<1x32xf32>
    %113 = arith.addf %111, %112 : vector<1x32xf32>
    %114 = math.tanh %113 : vector<1x32xf32>
    %115 = arith.mulf %105, %114 : vector<1x32xf32>
    %116 = vector.extract_strided_slice %7 {offsets = [5, 0], sizes = [1, 128], strides = [1, 1]} : vector<8x128xf32> to vector<1x128xf32>
    %cst_26 = arith.constant dense<0.000000e+00> : vector<1x128xf32>
    %117 = tpu.matmul %115, %8, %cst_26 {dimension_numbers = #tpu.dot_dimension_numbers<[1], [0], [0], [1], [0, 0, 1, 1], [], []>} : vector<1x32xf32>, vector<32x128xf32>, vector<1x128xf32> -> vector<1x128xf32>
    %118 = arith.addf %116, %117 : vector<1x128xf32>
    %119 = arith.negf %118 : vector<1x128xf32>
    %120 = math.exp %119 : vector<1x128xf32>
    %cst_27 = arith.constant 1.000000e+00 : f32
    %121 = vector.broadcast %cst_27 : f32 to vector<1x128xf32>
    %122 = arith.addf %121, %120 : vector<1x128xf32>
    %123 = arith.divf %121, %122 : vector<1x128xf32>
    %124 = vector.extract_strided_slice %123 {offsets = [0, 0], sizes = [1, 32], strides = [1, 1]} : vector<1x128xf32> to vector<1x32xf32>
    %125 = vector.extract_strided_slice %123 {offsets = [0, 32], sizes = [1, 32], strides = [1, 1]} : vector<1x128xf32> to vector<1x32xf32>
    %126 = vector.extract_strided_slice %123 {offsets = [0, 64], sizes = [1, 32], strides = [1, 1]} : vector<1x128xf32> to vector<1x32xf32>
    %127 = vector.extract_strided_slice %123 {offsets = [0, 96], sizes = [1, 32], strides = [1, 1]} : vector<1x128xf32> to vector<1x32xf32>
    %cst_28 = arith.constant 2.000000e+00 : f32
    %128 = vector.broadcast %cst_28 : f32 to vector<1x32xf32>
    %129 = arith.mulf %128, %127 : vector<1x32xf32>
    %cst_29 = arith.constant 1.000000e+00 : f32
    %130 = vector.broadcast %cst_29 : f32 to vector<1x32xf32>
    %131 = arith.subf %129, %130 : vector<1x32xf32>
    %132 = arith.mulf %125, %113 : vector<1x32xf32>
    %133 = arith.mulf %124, %131 : vector<1x32xf32>
    %134 = arith.addf %132, %133 : vector<1x32xf32>
    %135 = math.tanh %134 : vector<1x32xf32>
    %136 = arith.mulf %126, %135 : vector<1x32xf32>
    %137 = vector.extract_strided_slice %7 {offsets = [6, 0], sizes = [1, 128], strides = [1, 1]} : vector<8x128xf32> to vector<1x128xf32>
    %cst_30 = arith.constant dense<0.000000e+00> : vector<1x128xf32>
    %138 = tpu.matmul %136, %8, %cst_30 {dimension_numbers = #tpu.dot_dimension_numbers<[1], [0], [0], [1], [0, 0, 1, 1], [], []>} : vector<1x32xf32>, vector<32x128xf32>, vector<1x128xf32> -> vector<1x128xf32>
    %139 = arith.addf %137, %138 : vector<1x128xf32>
    %140 = arith.negf %139 : vector<1x128xf32>
    %141 = math.exp %140 : vector<1x128xf32>
    %cst_31 = arith.constant 1.000000e+00 : f32
    %142 = vector.broadcast %cst_31 : f32 to vector<1x128xf32>
    %143 = arith.addf %142, %141 : vector<1x128xf32>
    %144 = arith.divf %142, %143 : vector<1x128xf32>
    %145 = vector.extract_strided_slice %144 {offsets = [0, 0], sizes = [1, 32], strides = [1, 1]} : vector<1x128xf32> to vector<1x32xf32>
    %146 = vector.extract_strided_slice %144 {offsets = [0, 32], sizes = [1, 32], strides = [1, 1]} : vector<1x128xf32> to vector<1x32xf32>
    %147 = vector.extract_strided_slice %144 {offsets = [0, 64], sizes = [1, 32], strides = [1, 1]} : vector<1x128xf32> to vector<1x32xf32>
    %148 = vector.extract_strided_slice %144 {offsets = [0, 96], sizes = [1, 32], strides = [1, 1]} : vector<1x128xf32> to vector<1x32xf32>
    %cst_32 = arith.constant 2.000000e+00 : f32
    %149 = vector.broadcast %cst_32 : f32 to vector<1x32xf32>
    %150 = arith.mulf %149, %148 : vector<1x32xf32>
    %cst_33 = arith.constant 1.000000e+00 : f32
    %151 = vector.broadcast %cst_33 : f32 to vector<1x32xf32>
    %152 = arith.subf %150, %151 : vector<1x32xf32>
    %153 = arith.mulf %146, %134 : vector<1x32xf32>
    %154 = arith.mulf %145, %152 : vector<1x32xf32>
    %155 = arith.addf %153, %154 : vector<1x32xf32>
    %156 = math.tanh %155 : vector<1x32xf32>
    %157 = arith.mulf %147, %156 : vector<1x32xf32>
    %158 = vector.extract_strided_slice %7 {offsets = [7, 0], sizes = [1, 128], strides = [1, 1]} : vector<8x128xf32> to vector<1x128xf32>
    %cst_34 = arith.constant dense<0.000000e+00> : vector<1x128xf32>
    %159 = tpu.matmul %157, %8, %cst_34 {dimension_numbers = #tpu.dot_dimension_numbers<[1], [0], [0], [1], [0, 0, 1, 1], [], []>} : vector<1x32xf32>, vector<32x128xf32>, vector<1x128xf32> -> vector<1x128xf32>
    %160 = arith.addf %158, %159 : vector<1x128xf32>
    %161 = arith.negf %160 : vector<1x128xf32>
    %162 = math.exp %161 : vector<1x128xf32>
    %cst_35 = arith.constant 1.000000e+00 : f32
    %163 = vector.broadcast %cst_35 : f32 to vector<1x128xf32>
    %164 = arith.addf %163, %162 : vector<1x128xf32>
    %165 = arith.divf %163, %164 : vector<1x128xf32>
    %166 = vector.extract_strided_slice %165 {offsets = [0, 0], sizes = [1, 32], strides = [1, 1]} : vector<1x128xf32> to vector<1x32xf32>
    %167 = vector.extract_strided_slice %165 {offsets = [0, 32], sizes = [1, 32], strides = [1, 1]} : vector<1x128xf32> to vector<1x32xf32>
    %168 = vector.extract_strided_slice %165 {offsets = [0, 64], sizes = [1, 32], strides = [1, 1]} : vector<1x128xf32> to vector<1x32xf32>
    %169 = vector.extract_strided_slice %165 {offsets = [0, 96], sizes = [1, 32], strides = [1, 1]} : vector<1x128xf32> to vector<1x32xf32>
    %cst_36 = arith.constant 2.000000e+00 : f32
    %170 = vector.broadcast %cst_36 : f32 to vector<1x32xf32>
    %171 = arith.mulf %170, %169 : vector<1x32xf32>
    %cst_37 = arith.constant 1.000000e+00 : f32
    %172 = vector.broadcast %cst_37 : f32 to vector<1x32xf32>
    %173 = arith.subf %171, %172 : vector<1x32xf32>
    %174 = arith.mulf %167, %155 : vector<1x32xf32>
    %175 = arith.mulf %166, %173 : vector<1x32xf32>
    %176 = arith.addf %174, %175 : vector<1x32xf32>
    %177 = math.tanh %176 : vector<1x32xf32>
    %178 = arith.mulf %168, %177 : vector<1x32xf32>
    %179 = tpu.concatenate %31, %52, %73, %94, %115, %136, %157, %178 in 0 : vector<1x32xf32>, vector<1x32xf32>, vector<1x32xf32>, vector<1x32xf32>, vector<1x32xf32>, vector<1x32xf32>, vector<1x32xf32>, vector<1x32xf32> -> vector<8x32xf32>
    %c88 = arith.constant 88 : index
    %c0_38 = arith.constant 0 : index
    %180 = vector.load %arg1[%c88, %c0_38] : memref<336x128xf32, #tpu.memory_space<vmem>>, vector<32x128xf32>
    %c120 = arith.constant 120 : index
    %c0_39 = arith.constant 0 : index
    %181 = vector.load %arg1[%c120, %c0_39] : memref<336x128xf32, #tpu.memory_space<vmem>>, vector<1x128xf32>
    %c128 = arith.constant 128 : index
    %c0_40 = arith.constant 0 : index
    %182 = vector.load %arg1[%c128, %c0_40] : memref<336x128xf32, #tpu.memory_space<vmem>>, vector<128x64xf32>
    %c256 = arith.constant 256 : index
    %c0_41 = arith.constant 0 : index
    %183 = vector.load %arg1[%c256, %c0_41] : memref<336x128xf32, #tpu.memory_space<vmem>>, vector<1x64xf32>
    %c264 = arith.constant 264 : index
    %c0_42 = arith.constant 0 : index
    %184 = vector.load %arg1[%c264, %c0_42] : memref<336x128xf32, #tpu.memory_space<vmem>>, vector<64x10xf32>
    %c328 = arith.constant 328 : index
    %c0_43 = arith.constant 0 : index
    %185 = vector.load %arg1[%c328, %c0_43] : memref<336x128xf32, #tpu.memory_space<vmem>>, vector<1x10xf32>
    %cst_44 = arith.constant dense<0.000000e+00> : vector<8x128xf32>
    %186 = tpu.matmul %179, %180, %cst_44 {dimension_numbers = #tpu.dot_dimension_numbers<[1], [0], [0], [1], [0, 0, 1, 1], [], []>} : vector<8x32xf32>, vector<32x128xf32>, vector<8x128xf32> -> vector<8x128xf32>
    %187 = vector.broadcast %181 : vector<1x128xf32> to vector<8x128xf32>
    %188 = arith.addf %186, %187 : vector<8x128xf32>
    %cst_45 = arith.constant 0.000000e+00 : f32
    %189 = vector.broadcast %cst_45 : f32 to vector<8x128xf32>
    %190 = arith.maximumf %188, %189 : vector<8x128xf32>
    %cst_46 = arith.constant dense<0.000000e+00> : vector<8x64xf32>
    %191 = tpu.matmul %190, %182, %cst_46 {dimension_numbers = #tpu.dot_dimension_numbers<[1], [0], [0], [1], [0, 0, 1, 1], [], []>} : vector<8x128xf32>, vector<128x64xf32>, vector<8x64xf32> -> vector<8x64xf32>
    %192 = vector.broadcast %183 : vector<1x64xf32> to vector<8x64xf32>
    %193 = arith.addf %191, %192 : vector<8x64xf32>
    %cst_47 = arith.constant 0.000000e+00 : f32
    %194 = vector.broadcast %cst_47 : f32 to vector<8x64xf32>
    %195 = arith.maximumf %193, %194 : vector<8x64xf32>
    %cst_48 = arith.constant dense<0.000000e+00> : vector<8x10xf32>
    %196 = tpu.matmul %195, %184, %cst_48 {dimension_numbers = #tpu.dot_dimension_numbers<[1], [0], [0], [1], [0, 0, 1, 1], [], []>} : vector<8x64xf32>, vector<64x10xf32>, vector<8x10xf32> -> vector<8x10xf32>
    %197 = vector.broadcast %185 : vector<1x10xf32> to vector<8x10xf32>
    %198 = arith.addf %196, %197 : vector<8x10xf32>
    %c0_49 = arith.constant 0 : index
    %c0_50 = arith.constant 0 : index
    %199 = vector.load %arg2[%c0_49, %c0_50] : memref<8x10xf32, #tpu.memory_space<vmem>>, vector<8x10xf32>
    tpu.vector_store %arg2[%c0_49, %c0_50], %198 {strides = array<i32>} : memref<8x10xf32, #tpu.memory_space<vmem>>, vector<8x10xf32>,
    return
  }
}

</mosaic_0001>

<llo_original>
// kernel: forward.1
$region0: #{forward.1}
  #allocation0 [shape = 'u32[]', space=smem, size = 0x4, offset = 0x4, fixed_abs, tag = 'smem constant byte address 0x4 - core index']
  #allocation1 [shape = 'u32[72,128]{1,0:T(1,128)}', space=vmem, size = 0x9000, scoped, tag = 'internal scratch']
  %s0 = inlined_call_operand.vmem [shape: s32[8,1], index: 0, kind: input, shape index: {}]
  %s1 = inlined_call_operand.hbm [shape: f32[336,128], index: 1, kind: input, shape index: {}]
  %s2 = inlined_call_operand.hbm [shape: f32[8,10], index: 2, kind: output, shape index: {}]
  %s3 = sld [smem:[#allocation0]]
  $region22: #{forward.1} parent=0
    _
  %s5 = ssub.s32 1, %s3
  %s6 = scalar_select 0, %s5, %s3
  $region1: #{forward.1} parent=0
    #allocation2 [shape = 'u8[172032]{0}', space=vmem, size = 0x2a000, scoped, tag = 'input window, operand 1, single buffered']
    #allocation3 [shape = 's32[1]{0}', space=sflag, size = 0x4, scoped, tag = 'scoped memory for forward.1']
    #allocation4 [shape = 's32[1]{0}', space=sflag, size = 0x4, scoped, tag = 'scoped memory for forward.1']
    #allocation5 [shape = 'u8[4096]{0}', space=vmem, size = 0x1000, scoped, tag = 'output window, operand 0, single buffered']
    %7 = vsyncpa [#allocation3], 0
    %8 = vsyncpa [#allocation4], 0
    // Predicated region
    $region2: #{forward.1} parent=1 // pred_check
      _
    $region3: #{forward.1} parent=1 // pred_check_branch
      %10 = sbr.rel (0) target = $region5
    $region4: #{forward.1} parent=1 // pred_region
      _
    $region5: #{forward.1} parent=1 // pred_fallthru
      _
    // Predicated region
    $region6: #{forward.1} parent=1 // pred_check
      _
    $region7: #{forward.1} parent=1 // pred_check_branch
      %12 = sbr.rel (0) target = $region9
    $region8: #{forward.1} parent=1 // pred_region
      %14 = vsyncadd [#allocation3], 0
      %s15 = sshll.u32 %s1, 4
      %s16 = int_to_ptr.hbm [resolvable:$true] %s15
      %s17 = sshll.u32 [#allocation2], 4
      %s18 = int_to_ptr.vmem [resolvable:$true] %s17
      %23 = dma.hbm_to_vmem [thread:$0]  %s16, 5376, %s18, [#allocation3], 128, 128, 8
    $region9: #{forward.1} parent=1 // pred_fallthru
      _
    // Predicated region
    $region10: #{forward.1} parent=1 // pred_check
      _
    $region11: #{forward.1} parent=1 // pred_check_branch
      %25 = sbr.rel (0) target = $region13
    $region12: #{forward.1} parent=1 // pred_region
      %27 = dma.done [#allocation3], 5376
    $region13: #{forward.1} parent=1 // pred_fallthru
      _
    %v28 = vld [vmem:[%s0] sm:$0xff]
    %v29 = vlaneseq
    %v30 = vand.u32 %v29, 127
    %31 = vset.pattern.permute.xlu0 0
    %32 = vperm.xlu0 %31, %v28
    %v33 = vpop.permute.xlu0 %32
    %vm34 = vcmp.eq.s32.totalorder %v30, %v33
    %v35 = vsel %vm34, 1, 0
    %v36 = vcvt.s32.f32 %v35
    %v37 = vld [vmem:[#allocation2] sm:$0xff]
    %v38 = vld [vmem:[#allocation2 + $0x8] sm:$0xff]
    %v39 = vld [vmem:[#allocation2 + $0x10] sm:$0xff]
    %v40 = vld [vmem:[#allocation2 + $0x18] sm:$0xff]
    %v41 = vld [vmem:[#allocation2 + $0x20] sm:$0xff]
    %v42 = vld [vmem:[#allocation2 + $0x28] sm:$0xff]
    %v43 = vld [vmem:[#allocation2 + $0x30] sm:$0x3]
    %vm44 = vcmask 408576
    %v46 = vsel %vm44, %v36, 0
    %vm48 = vcmask 1041408
    %v50 = vsel %vm48, %v43, 0
    %52 = vmatpush.msra.mxu0 0.0
    %53 = vmatpush.msra.mxu0 0.0
    %54 = vmatpush.msra.mxu0 0.0
    %55 = vmatpush.msra.mxu0 0.0
    %56 = vmatpush.msra.mxu0 0.0
    %57 = vmatpush.msra.mxu0 0.0
    %58 = vmatpush.msra.mxu0 0.0
    %59 = vmatpush.msra.mxu0 0.0
    %60 = vmatpush.msra.mxu0 0.0
    %61 = vmatpush.msra.mxu0 %v50
    %62 = vmatpush.msra.mxu0 %v42
    %63 = vmatpush.msra.mxu0 %v41
    %64 = vmatpush.msra.mxu0 %v40
    %65 = vmatpush.msra.mxu0 %v39
    %66 = vmatpush.msra.mxu0 %v38
    %67 = vmatpush.msra.mxu0 %v37
    %68 = vmatmul.f32.gmra.mxu0 %v46
    %v69 = vpop.f32.mrf.mxu0
    %v70 = vadd.f32 0.0, %v69
    %71 = vdwg.mxu0
    %v72 = vld [vmem:[#allocation2 + $0x38] sm:$0xff]
    %v73 = vld [vmem:[#allocation2 + $0x40] sm:$0xff]
    %v74 = vld [vmem:[#allocation2 + $0x48] sm:$0xff]
    %v75 = vld [vmem:[#allocation2 + $0x50] sm:$0xff]
    %vm76 = vcmask 261120
    %v78 = vsel %vm76, 0.0, 0
    %80 = vmatpush.msra.mxu0 0.0
    %81 = vmatpush.msra.mxu0 0.0
    %82 = vmatpush.msra.mxu0 0.0
    %83 = vmatpush.msra.mxu0 0.0
    %84 = vmatpush.msra.mxu0 0.0
    %85 = vmatpush.msra.mxu0 0.0
    %86 = vmatpush.msra.mxu0 0.0
    %87 = vmatpush.msra.mxu0 0.0
    %88 = vmatpush.msra.mxu0 0.0
    %89 = vmatpush.msra.mxu0 0.0
    %90 = vmatpush.msra.mxu0 0.0
    %91 = vmatpush.msra.mxu0 0.0
    %92 = vmatpush.msra.mxu0 %v75
    %93 = vmatpush.msra.mxu0 %v74
    %94 = vmatpush.msra.mxu0 %v73
    %95 = vmatpush.msra.mxu0 %v72
    %96 = vmatmul.f32.gmra.mxu0 %v78
    %v97 = vpop.f32.mrf.mxu0
    %v98 = vadd.f32 0.0, %v97
    %99 = vdwg.mxu0
    %v100 = vadd.f32 %v70, %v98
    %v101 = vxor.u32 %v100, 2147483648
    %v102 = vmul.f32 %v101, 1.442695
    %v103 = vpow.pop %v102
    %v104 = vadd.f32 %v103, 1.0
    %v105 = vrcp.pop %v104
    %v106 = vmul.f32 %v104, %v105
    %v107 = vsub.f32 1.0, %v106
    %v108 = vmul.f32 %v105, %v107
    %v109 = vadd.f32 %v105, %v108
    %vm110 = vweird.f32 %v104
    %vm111 = vweird.f32 %v105
    %vm112 = vmor %vm110, %vm111
    %v113 = vsel %vm112, %v105, %v109
    %v114 = vand.u32 2147483647, %v104
    %vm115 = vcmp.eq.f32.partialorder %v114, 8.507059e+37
    %v116 = vand.u32 %v104, 2147483648
    %v117 = vor.u32 1.1754944e-38, %v116
    %v118 = vsel %vm115, %v117, %v113
    %v119 = vmul.f32 1.0, %v118
    %v120 = vmul.f32 %v119, 2.0
    %v121 = vsub.f32 %v120, 1.0
    %v122 = vmul.f32 %v119, 0.0
    %124 = vrot.lane.b32.xlu0 %v121, 32
    %v125 = vpop.permute.xlu0 %124
    %v127 = vmul.f32 %v119, %v125
    %129 = vrot.lane.b32.xlu0 %v127, 32
    %v130 = vpop.permute.xlu0 %129
    %v132 = vadd.f32 %v122, %v130
    %v133 = vtanh.pop %v132
    %135 = vrot.lane.b32.xlu0 %v133, 32
    %v136 = vpop.permute.xlu0 %135
    %v138 = vmul.f32 %v119, %v136
    %140 = vrot.lane.b32.xlu0 %v138, 64
    %v141 = vpop.permute.xlu0 %140
    %v142 = vsel %vm76, %v141, 0
    %144 = vmatpush.msra.mxu0 0.0
    %145 = vmatpush.msra.mxu0 0.0
    %146 = vmatpush.msra.mxu0 0.0
    %147 = vmatpush.msra.mxu0 0.0
    %148 = vmatpush.msra.mxu0 0.0
    %149 = vmatpush.msra.mxu0 0.0
    %150 = vmatpush.msra.mxu0 0.0
    %151 = vmatpush.msra.mxu0 0.0
    %152 = vmatpush.msra.mxu0 0.0
    %153 = vmatpush.msra.mxu0 0.0
    %154 = vmatpush.msra.mxu0 0.0
    %155 = vmatpush.msra.mxu0 0.0
    %156 = vmatpush.msra.mxu0 %v75
    %157 = vmatpush.msra.mxu0 %v74
    %158 = vmatpush.msra.mxu0 %v73
    %159 = vmatpush.msra.mxu0 %v72
    %160 = vmatmul.f32.gmra.mxu0 %v142
    %v161 = vpop.f32.mrf.mxu0
    %v162 = vadd.f32 0.0, %v161
    %163 = vdwg.mxu0
    %v165 = vrot.slane %v162, 7
    %v167 = vadd.f32 %v70, %v165
    %v168 = vxor.u32 %v167, 2147483648
    %v169 = vmul.f32 %v168, 1.442695
    %v170 = vpow.pop %v169
    %v171 = vadd.f32 %v170, 1.0
    %v172 = vrcp.pop %v171
    %v173 = vmul.f32 %v171, %v172
    %v174 = vsub.f32 1.0, %v173
    %v175 = vmul.f32 %v172, %v174
    %v176 = vadd.f32 %v172, %v175
    %vm177 = vweird.f32 %v171
    %vm178 = vweird.f32 %v172
    %vm179 = vmor %vm177, %vm178
    %v180 = vsel %vm179, %v172, %v176
    %v181 = vand.u32 2147483647, %v171
    %vm182 = vcmp.eq.f32.partialorder %v181, 8.507059e+37
    %v183 = vand.u32 %v171, 2147483648
    %v184 = vor.u32 1.1754944e-38, %v183
    %v185 = vsel %vm182, %v184, %v180
    %v186 = vmul.f32 1.0, %v185
    %v187 = vmul.f32 %v186, 2.0
    %v188 = vsub.f32 %v187, 1.0
    %v190 = vrot.slane %v132, 7
    %v192 = vmul.f32 %v186, %v190
    %194 = vrot.lane.b32.xlu0 %v188, 32
    %v195 = vpop.permute.xlu0 %194
    %v197 = vmul.f32 %v186, %v195
    %199 = vrot.lane.b32.xlu0 %v197, 32
    %v200 = vpop.permute.xlu0 %199
    %v202 = vadd.f32 %v192, %v200
    %v203 = vtanh.pop %v202
    %205 = vrot.lane.b32.xlu0 %v203, 32
    %v206 = vpop.permute.xlu0 %205
    %v208 = vmul.f32 %v186, %v206
    %v210 = vrot.slane %v208, 1
    %211 = vrot.lane.b32.xlu0 %v210, 64
    %v212 = vpop.permute.xlu0 %211
    %v213 = vsel %vm76, %v212, 0
    %215 = vmatpush.msra.mxu0 0.0
    %216 = vmatpush.msra.mxu0 0.0
    %217 = vmatpush.msra.mxu0 0.0
    %218 = vmatpush.msra.mxu0 0.0
    %219 = vmatpush.msra.mxu0 0.0
    %220 = vmatpush.msra.mxu0 0.0
    %221 = vmatpush.msra.mxu0 0.0
    %222 = vmatpush.msra.mxu0 0.0
    %223 = vmatpush.msra.mxu0 0.0
    %224 = vmatpush.msra.mxu0 0.0
    %225 = vmatpush.msra.mxu0 0.0
    %226 = vmatpush.msra.mxu0 0.0
    %227 = vmatpush.msra.mxu0 %v75
    %228 = vmatpush.msra.mxu0 %v74
    %229 = vmatpush.msra.mxu0 %v73
    %230 = vmatpush.msra.mxu0 %v72
    %231 = vmatmul.f32.gmra.mxu0 %v213
    %v232 = vpop.f32.mrf.mxu0
    %v233 = vadd.f32 0.0, %v232
    %234 = vdwg.mxu0
    %v236 = vrot.slane %v233, 6
    %v238 = vadd.f32 %v70, %v236
    %v239 = vxor.u32 %v238, 2147483648
    %v240 = vmul.f32 %v239, 1.442695
    %v241 = vpow.pop %v240
    %v242 = vadd.f32 %v241, 1.0
    %v243 = vrcp.pop %v242
    %v244 = vmul.f32 %v242, %v243
    %v245 = vsub.f32 1.0, %v244
    %v246 = vmul.f32 %v243, %v245
    %v247 = vadd.f32 %v243, %v246
    %vm248 = vweird.f32 %v242
    %vm249 = vweird.f32 %v243
    %vm250 = vmor %vm248, %vm249
    %v251 = vsel %vm250, %v243, %v247
    %v252 = vand.u32 2147483647, %v242
    %vm253 = vcmp.eq.f32.partialorder %v252, 8.507059e+37
    %v254 = vand.u32 %v242, 2147483648
    %v255 = vor.u32 1.1754944e-38, %v254
    %v256 = vsel %vm253, %v255, %v251
    %v257 = vmul.f32 1.0, %v256
    %v258 = vmul.f32 %v257, 2.0
    %v259 = vsub.f32 %v258, 1.0
    %v261 = vrot.slane %v202, 7
    %v263 = vmul.f32 %v257, %v261
    %265 = vrot.lane.b32.xlu0 %v259, 32
    %v266 = vpop.permute.xlu0 %265
    %v268 = vmul.f32 %v257, %v266
    %270 = vrot.lane.b32.xlu0 %v268, 32
    %v271 = vpop.permute.xlu0 %270
    %v273 = vadd.f32 %v263, %v271
    %v274 = vtanh.pop %v273
    %276 = vrot.lane.b32.xlu0 %v274, 32
    %v277 = vpop.permute.xlu0 %276
    %v279 = vmul.f32 %v257, %v277
    %v281 = vrot.slane %v279, 2
    %282 = vrot.lane.b32.xlu0 %v281, 64
    %v283 = vpop.permute.xlu0 %282
    %v284 = vsel %vm76, %v283, 0
    %286 = vmatpush.msra.mxu0 0.0
    %287 = vmatpush.msra.mxu0 0.0
    %288 = vmatpush.msra.mxu0 0.0
    %289 = vmatpush.msra.mxu0 0.0
    %290 = vmatpush.msra.mxu0 0.0
    %291 = vmatpush.msra.mxu0 0.0
    %292 = vmatpush.msra.mxu0 0.0
    %293 = vmatpush.msra.mxu0 0.0
    %294 = vmatpush.msra.mxu0 0.0
    %295 = vmatpush.msra.mxu0 0.0
    %296 = vmatpush.msra.mxu0 0.0
    %297 = vmatpush.msra.mxu0 0.0
    %298 = vmatpush.msra.mxu0 %v75
    %299 = vmatpush.msra.mxu0 %v74
    %300 = vmatpush.msra.mxu0 %v73
    %301 = vmatpush.msra.mxu0 %v72
    %302 = vmatmul.f32.gmra.mxu0 %v284
    %v303 = vpop.f32.mrf.mxu0
    %v304 = vadd.f32 0.0, %v303
    %305 = vdwg.mxu0
    %v307 = vrot.slane %v304, 5
    %v309 = vadd.f32 %v70, %v307
    %v310 = vxor.u32 %v309, 2147483648
    %v311 = vmul.f32 %v310, 1.442695
    %v312 = vpow.pop %v311
    %v313 = vadd.f32 %v312, 1.0
    %v314 = vrcp.pop %v313
    %v315 = vmul.f32 %v313, %v314
    %v316 = vsub.f32 1.0, %v315
    %v317 = vmul.f32 %v314, %v316
    %v318 = vadd.f32 %v314, %v317
    %vm319 = vweird.f32 %v313
    %vm320 = vweird.f32 %v314
    %vm321 = vmor %vm319, %vm320
    %v322 = vsel %vm321, %v314, %v318
    %v323 = vand.u32 2147483647, %v313
    %vm324 = vcmp.eq.f32.partialorder %v323, 8.507059e+37
    %v325 = vand.u32 %v313, 2147483648
    %v326 = vor.u32 1.1754944e-38, %v325
    %v327 = vsel %vm324, %v326, %v322
    %v328 = vmul.f32 1.0, %v327
    %v329 = vmul.f32 %v328, 2.0
    %v330 = vsub.f32 %v329, 1.0
    %v332 = vrot.slane %v273, 7
    %v334 = vmul.f32 %v328, %v332
    %336 = vrot.lane.b32.xlu0 %v330, 32
    %v337 = vpop.permute.xlu0 %336
    %v339 = vmul.f32 %v328, %v337
    %341 = vrot.lane.b32.xlu0 %v339, 32
    %v342 = vpop.permute.xlu0 %341
    %v344 = vadd.f32 %v334, %v342
    %v345 = vtanh.pop %v344
    %347 = vrot.lane.b32.xlu0 %v345, 32
    %v348 = vpop.permute.xlu0 %347
    %v350 = vmul.f32 %v328, %v348
    %v352 = vrot.slane %v350, 3
    %353 = vrot.lane.b32.xlu0 %v352, 64
    %v354 = vpop.permute.xlu0 %353
    %v355 = vsel %vm76, %v354, 0
    %357 = vmatpush.msra.mxu0 0.0
    %358 = vmatpush.msra.mxu0 0.0
    %359 = vmatpush.msra.mxu0 0.0
    %360 = vmatpush.msra.mxu0 0.0
    %361 = vmatpush.msra.mxu0 0.0
    %362 = vmatpush.msra.mxu0 0.0
    %363 = vmatpush.msra.mxu0 0.0
    %364 = vmatpush.msra.mxu0 0.0
    %365 = vmatpush.msra.mxu0 0.0
    %366 = vmatpush.msra.mxu0 0.0
    %367 = vmatpush.msra.mxu0 0.0
    %368 = vmatpush.msra.mxu0 0.0
    %369 = vmatpush.msra.mxu0 %v75
    %370 = vmatpush.msra.mxu0 %v74
    %371 = vmatpush.msra.mxu0 %v73
    %372 = vmatpush.msra.mxu0 %v72
    %373 = vmatmul.f32.gmra.mxu0 %v355
    %v374 = vpop.f32.mrf.mxu0
    %v375 = vadd.f32 0.0, %v374
    %376 = vdwg.mxu0
    %v378 = vrot.slane %v375, 4
    %v380 = vadd.f32 %v70, %v378
    %v381 = vxor.u32 %v380, 2147483648
    %v382 = vmul.f32 %v381, 1.442695
    %v383 = vpow.pop %v382
    %v384 = vadd.f32 %v383, 1.0
    %v385 = vrcp.pop %v384
    %v386 = vmul.f32 %v384, %v385
    %v387 = vsub.f32 1.0, %v386
    %v388 = vmul.f32 %v385, %v387
    %v389 = vadd.f32 %v385, %v388
    %vm390 = vweird.f32 %v384
    %vm391 = vweird.f32 %v385
    %vm392 = vmor %vm390, %vm391
    %v393 = vsel %vm392, %v385, %v389
    %v394 = vand.u32 2147483647, %v384
    %vm395 = vcmp.eq.f32.partialorder %v394, 8.507059e+37
    %v396 = vand.u32 %v384, 2147483648
    %v397 = vor.u32 1.1754944e-38, %v396
    %v398 = vsel %vm395, %v397, %v393
    %v399 = vmul.f32 1.0, %v398
    %v400 = vmul.f32 %v399, 2.0
    %v401 = vsub.f32 %v400, 1.0
    %v403 = vrot.slane %v344, 7
    %v405 = vmul.f32 %v399, %v403
    %407 = vrot.lane.b32.xlu0 %v401, 32
    %v408 = vpop.permute.xlu0 %407
    %v410 = vmul.f32 %v399, %v408
    %412 = vrot.lane.b32.xlu0 %v410, 32
    %v413 = vpop.permute.xlu0 %412
    %v415 = vadd.f32 %v405, %v413
    %v416 = vtanh.pop %v415
    %418 = vrot.lane.b32.xlu0 %v416, 32
    %v419 = vpop.permute.xlu0 %418
    %v421 = vmul.f32 %v399, %v419
    %v423 = vrot.slane %v421, 4
    %424 = vrot.lane.b32.xlu0 %v423, 64
    %v425 = vpop.permute.xlu0 %424
    %v426 = vsel %vm76, %v425, 0
    %428 = vmatpush.msra.mxu0 0.0
    %429 = vmatpush.msra.mxu0 0.0
    %430 = vmatpush.msra.mxu0 0.0
    %431 = vmatpush.msra.mxu0 0.0
    %432 = vmatpush.msra.mxu0 0.0
    %433 = vmatpush.msra.mxu0 0.0
    %434 = vmatpush.msra.mxu0 0.0
    %435 = vmatpush.msra.mxu0 0.0
    %436 = vmatpush.msra.mxu0 0.0
    %437 = vmatpush.msra.mxu0 0.0
    %438 = vmatpush.msra.mxu0 0.0
    %439 = vmatpush.msra.mxu0 0.0
    %440 = vmatpush.msra.mxu0 %v75
    %441 = vmatpush.msra.mxu0 %v74
    %442 = vmatpush.msra.mxu0 %v73
    %443 = vmatpush.msra.mxu0 %v72
    %444 = vmatmul.f32.gmra.mxu0 %v426
    %v445 = vpop.f32.mrf.mxu0
    %v446 = vadd.f32 0.0, %v445
    %447 = vdwg.mxu0
    %v449 = vrot.slane %v446, 3
    %v451 = vadd.f32 %v70, %v449
    %v452 = vxor.u32 %v451, 2147483648
    %v453 = vmul.f32 %v452, 1.442695
    %v454 = vpow.pop %v453
    %v455 = vadd.f32 %v454, 1.0
    %v456 = vrcp.pop %v455
    %v457 = vmul.f32 %v455, %v456
    %v458 = vsub.f32 1.0, %v457
    %v459 = vmul.f32 %v456, %v458
    %v460 = vadd.f32 %v456, %v459
    %vm461 = vweird.f32 %v455
    %vm462 = vweird.f32 %v456
    %vm463 = vmor %vm461, %vm462
    %v464 = vsel %vm463, %v456, %v460
    %v465 = vand.u32 2147483647, %v455
    %vm466 = vcmp.eq.f32.partialorder %v465, 8.507059e+37
    %v467 = vand.u32 %v455, 2147483648
    %v468 = vor.u32 1.1754944e-38, %v467
    %v469 = vsel %vm466, %v468, %v464
    %v470 = vmul.f32 1.0, %v469
    %v471 = vmul.f32 %v470, 2.0
    %v472 = vsub.f32 %v471, 1.0
    %v474 = vrot.slane %v415, 7
    %v476 = vmul.f32 %v470, %v474
    %478 = vrot.lane.b32.xlu0 %v472, 32
    %v479 = vpop.permute.xlu0 %478
    %v481 = vmul.f32 %v470, %v479
    %483 = vrot.lane.b32.xlu0 %v481, 32
    %v484 = vpop.permute.xlu0 %483
    %v486 = vadd.f32 %v476, %v484
    %v487 = vtanh.pop %v486
    %489 = vrot.lane.b32.xlu0 %v487, 32
    %v490 = vpop.permute.xlu0 %489
    %v492 = vmul.f32 %v470, %v490
    %v494 = vrot.slane %v492, 5
    %495 = vrot.lane.b32.xlu0 %v494, 64
    %v496 = vpop.permute.xlu0 %495
    %v497 = vsel %vm76, %v496, 0
    %499 = vmatpush.msra.mxu0 0.0
    %500 = vmatpush.msra.mxu0 0.0
    %501 = vmatpush.msra.mxu0 0.0
    %502 = vmatpush.msra.mxu0 0.0
    %503 = vmatpush.msra.mxu0 0.0
    %504 = vmatpush.msra.mxu0 0.0
    %505 = vmatpush.msra.mxu0 0.0
    %506 = vmatpush.msra.mxu0 0.0
    %507 = vmatpush.msra.mxu0 0.0
    %508 = vmatpush.msra.mxu0 0.0
    %509 = vmatpush.msra.mxu0 0.0
    %510 = vmatpush.msra.mxu0 0.0
    %511 = vmatpush.msra.mxu0 %v75
    %512 = vmatpush.msra.mxu0 %v74
    %513 = vmatpush.msra.mxu0 %v73
    %514 = vmatpush.msra.mxu0 %v72
    %515 = vmatmul.f32.gmra.mxu0 %v497
    %v516 = vpop.f32.mrf.mxu0
    %v517 = vadd.f32 0.0, %v516
    %518 = vdwg.mxu0
    %v520 = vrot.slane %v517, 2
    %v522 = vadd.f32 %v70, %v520
    %v523 = vxor.u32 %v522, 2147483648
    %v524 = vmul.f32 %v523, 1.442695
    %v525 = vpow.pop %v524
    %v526 = vadd.f32 %v525, 1.0
    %v527 = vrcp.pop %v526
    %v528 = vmul.f32 %v526, %v527
    %v529 = vsub.f32 1.0, %v528
    %v530 = vmul.f32 %v527, %v529
    %v531 = vadd.f32 %v527, %v530
    %vm532 = vweird.f32 %v526
    %vm533 = vweird.f32 %v527
    %vm534 = vmor %vm532, %vm533
    %v535 = vsel %vm534, %v527, %v531
    %v536 = vand.u32 2147483647, %v526
    %vm537 = vcmp.eq.f32.partialorder %v536, 8.507059e+37
    %v538 = vand.u32 %v526, 2147483648
    %v539 = vor.u32 1.1754944e-38, %v538
    %v540 = vsel %vm537, %v539, %v535
    %v541 = vmul.f32 1.0, %v540
    %v542 = vmul.f32 %v541, 2.0
    %v543 = vsub.f32 %v542, 1.0
    %v545 = vrot.slane %v486, 7
    %v547 = vmul.f32 %v541, %v545
    %549 = vrot.lane.b32.xlu0 %v543, 32
    %v550 = vpop.permute.xlu0 %549
    %v552 = vmul.f32 %v541, %v550
    %554 = vrot.lane.b32.xlu0 %v552, 32
    %v555 = vpop.permute.xlu0 %554
    %v557 = vadd.f32 %v547, %v555
    %v558 = vtanh.pop %v557
    %560 = vrot.lane.b32.xlu0 %v558, 32
    %v561 = vpop.permute.xlu0 %560
    %v563 = vmul.f32 %v541, %v561
    %v565 = vrot.slane %v563, 6
    %566 = vrot.lane.b32.xlu0 %v565, 64
    %v567 = vpop.permute.xlu0 %566
    %v568 = vsel %vm76, %v567, 0
    %570 = vmatpush.msra.mxu0 0.0
    %571 = vmatpush.msra.mxu0 0.0
    %572 = vmatpush.msra.mxu0 0.0
    %573 = vmatpush.msra.mxu0 0.0
    %574 = vmatpush.msra.mxu0 0.0
    %575 = vmatpush.msra.mxu0 0.0
    %576 = vmatpush.msra.mxu0 0.0
    %577 = vmatpush.msra.mxu0 0.0
    %578 = vmatpush.msra.mxu0 0.0
    %579 = vmatpush.msra.mxu0 0.0
    %580 = vmatpush.msra.mxu0 0.0
    %581 = vmatpush.msra.mxu0 0.0
    %582 = vmatpush.msra.mxu0 %v75
    %583 = vmatpush.msra.mxu0 %v74
    %584 = vmatpush.msra.mxu0 %v73
    %585 = vmatpush.msra.mxu0 %v72
    %586 = vmatmul.f32.gmra.mxu0 %v568
    %v587 = vpop.f32.mrf.mxu0
    %v588 = vadd.f32 0.0, %v587
    %589 = vdwg.mxu0
    %v591 = vrot.slane %v588, 1
    %v593 = vadd.f32 %v70, %v591
    %v594 = vxor.u32 %v593, 2147483648
    %v595 = vmul.f32 %v594, 1.442695
    %v596 = vpow.pop %v595
    %v597 = vadd.f32 %v596, 1.0
    %v598 = vrcp.pop %v597
    %v599 = vmul.f32 %v597, %v598
    %v600 = vsub.f32 1.0, %v599
    %v601 = vmul.f32 %v598, %v600
    %v602 = vadd.f32 %v598, %v601
    %vm603 = vweird.f32 %v597
    %vm604 = vweird.f32 %v598
    %vm605 = vmor %vm603, %vm604
    %v606 = vsel %vm605, %v598, %v602
    %v607 = vand.u32 2147483647, %v597
    %vm608 = vcmp.eq.f32.partialorder %v607, 8.507059e+37
    %v609 = vand.u32 %v597, 2147483648
    %v610 = vor.u32 1.1754944e-38, %v609
    %v611 = vsel %vm608, %v610, %v606
    %v612 = vmul.f32 1.0, %v611
    %v613 = vmul.f32 %v612, 2.0
    %v614 = vsub.f32 %v613, 1.0
    %v616 = vrot.slane %v557, 7
    %v618 = vmul.f32 %v612, %v616
    %620 = vrot.lane.b32.xlu0 %v614, 32
    %v621 = vpop.permute.xlu0 %620
    %v623 = vmul.f32 %v612, %v621
    %625 = vrot.lane.b32.xlu0 %v623, 32
    %v626 = vpop.permute.xlu0 %625
    %v628 = vadd.f32 %v618, %v626
    %v629 = vtanh.pop %v628
    %631 = vrot.lane.b32.xlu0 %v629, 32
    %v632 = vpop.permute.xlu0 %631
    %v634 = vmul.f32 %v612, %v632
    %vm635 = vcmask 1040384
    %v636 = vsel %vm635, %v138, %v208
    %v637 = vsel %vm48, %v636, %v279
    %vm638 = vcmask 1042432
    %v639 = vsel %vm638, %v637, %v350
    %vm640 = vcmask 1043456
    %v641 = vsel %vm640, %v639, %v421
    %vm642 = vcmask 1044480
    %v643 = vsel %vm642, %v641, %v492
    %vm644 = vcmask 1045504
    %v645 = vsel %vm644, %v643, %v563
    %vm646 = vcmask 1046528
    %v647 = vsel %vm646, %v645, %v634
    %v648 = vld [vmem:[#allocation2 + $0x58] sm:$0xff]
    %v649 = vld [vmem:[#allocation2 + $0x60] sm:$0xff]
    %v650 = vld [vmem:[#allocation2 + $0x68] sm:$0xff]
    %v651 = vld [vmem:[#allocation2 + $0x70] sm:$0xff]
    %v652 = vld [vmem:[#allocation2 + $0x78] sm:$0x1]
    %v653 = vld [vmem:[#allocation2 + $0x80] sm:$0xff]
    %v654 = vld [vmem:[#allocation2 + $0x88] sm:$0xff]
    %v655 = vld [vmem:[#allocation2 + $0x90] sm:$0xff]
    %v656 = vld [vmem:[#allocation2 + $0x98] sm:$0xff]
    %v657 = vld [vmem:[#allocation2 + $0xa0] sm:$0xff]
    %v658 = vld [vmem:[#allocation2 + $0xa8] sm:$0xff]
    %v659 = vld [vmem:[#allocation2 + $0xb0] sm:$0xff]
    %v660 = vld [vmem:[#allocation2 + $0xb8] sm:$0xff]
    %v661 = vld [vmem:[#allocation2 + $0xc0] sm:$0xff]
    %v662 = vld [vmem:[#allocation2 + $0xc8] sm:$0xff]
    %v663 = vld [vmem:[#allocation2 + $0xd0] sm:$0xff]
    %v664 = vld [vmem:[#allocation2 + $0xd8] sm:$0xff]
    %v665 = vld [vmem:[#allocation2 + $0xe0] sm:$0xff]
    %v666 = vld [vmem:[#allocation2 + $0xe8] sm:$0xff]
    %v667 = vld [vmem:[#allocation2 + $0xf0] sm:$0xff]
    %v668 = vld [vmem:[#allocation2 + $0xf8] sm:$0xff]
    %v669 = vld [vmem:[#allocation2 + $0x100] sm:$0x1]
    %v670 = vld [vmem:[#allocation2 + $0x108] sm:$0xff]
    %v671 = vld [vmem:[#allocation2 + $0x110] sm:$0xff]
    %v672 = vld [vmem:[#allocation2 + $0x118] sm:$0xff]
    %v673 = vld [vmem:[#allocation2 + $0x120] sm:$0xff]
    %v674 = vld [vmem:[#allocation2 + $0x128] sm:$0xff]
    %v675 = vld [vmem:[#allocation2 + $0x130] sm:$0xff]
    %v676 = vld [vmem:[#allocation2 + $0x138] sm:$0xff]
    %v677 = vld [vmem:[#allocation2 + $0x140] sm:$0xff]
    %v678 = vld [vmem:[#allocation2 + $0x148] sm:$0x1]
    %v679 = vperm.slane %v652, 0
    %681 = vrot.lane.b32.xlu0 %v647, 64
    %v682 = vpop.permute.xlu0 %681
    %v683 = vsel %vm76, %v682, 0
    %685 = vmatpush.msra.mxu0 0.0
    %686 = vmatpush.msra.mxu0 0.0
    %687 = vmatpush.msra.mxu0 0.0
    %688 = vmatpush.msra.mxu0 0.0
    %689 = vmatpush.msra.mxu0 0.0
    %690 = vmatpush.msra.mxu0 0.0
    %691 = vmatpush.msra.mxu0 0.0
    %692 = vmatpush.msra.mxu0 0.0
    %693 = vmatpush.msra.mxu0 0.0
    %694 = vmatpush.msra.mxu0 0.0
    %695 = vmatpush.msra.mxu0 0.0
    %696 = vmatpush.msra.mxu0 0.0
    %697 = vmatpush.msra.mxu0 %v651
    %698 = vmatpush.msra.mxu0 %v650
    %699 = vmatpush.msra.mxu0 %v649
    %700 = vmatpush.msra.mxu0 %v648
    %701 = vmatmul.f32.gmra.mxu0 %v683
    %v702 = vpop.f32.mrf.mxu0
    %v703 = vadd.f32 %v679, %v702
    %704 = vdwg.mxu0
    %v705 = vmax.f32 %v703, 0.0
    %v706 = vperm.slane %v669, 0
    %707 = vmatpush.msra.mxu0 %v668
    %708 = vmatpush.msra.mxu0 %v667
    %709 = vmatpush.msra.mxu0 %v666
    %710 = vmatpush.msra.mxu0 %v665
    %711 = vmatpush.msra.mxu0 %v664
    %712 = vmatpush.msra.mxu0 %v663
    %713 = vmatpush.msra.mxu0 %v662
    %714 = vmatpush.msra.mxu0 %v661
    %715 = vmatpush.msra.mxu0 %v660
    %716 = vmatpush.msra.mxu0 %v659
    %717 = vmatpush.msra.mxu0 %v658
    %718 = vmatpush.msra.mxu0 %v657
    %719 = vmatpush.msra.mxu0 %v656
    %720 = vmatpush.msra.mxu0 %v655
    %721 = vmatpush.msra.mxu0 %v654
    %722 = vmatpush.msra.mxu0 %v653
    %723 = vmatmul.f32.gmra.mxu0 %v705
    %v724 = vpop.f32.mrf.mxu0
    %v725 = vadd.f32 %v706, %v724
    %726 = vdwg.mxu0
    %v727 = vmax.f32 %v725, 0.0
    %v728 = vperm.slane %v678, 0
    %vm729 = vcmask 523264
    %v731 = vsel %vm729, %v727, 0
    %733 = vmatpush.msra.mxu0 0.0
    %734 = vmatpush.msra.mxu0 0.0
    %735 = vmatpush.msra.mxu0 0.0
    %736 = vmatpush.msra.mxu0 0.0
    %737 = vmatpush.msra.mxu0 0.0
    %738 = vmatpush.msra.mxu0 0.0
    %739 = vmatpush.msra.mxu0 0.0
    %740 = vmatpush.msra.mxu0 0.0
    %741 = vmatpush.msra.mxu0 %v677
    %742 = vmatpush.msra.mxu0 %v676
    %743 = vmatpush.msra.mxu0 %v675
    %744 = vmatpush.msra.mxu0 %v674
    %745 = vmatpush.msra.mxu0 %v673
    %746 = vmatpush.msra.mxu0 %v672
    %747 = vmatpush.msra.mxu0 %v671
    %748 = vmatpush.msra.mxu0 %v670
    %749 = vmatmul.f32.gmra.mxu0 %v731
    %v750 = vpop.f32.mrf.mxu0
    %v751 = vadd.f32 %v728, %v750
    %752 = vdwg.mxu0
    %vm753 = vcmask 80896
    %754 = vst.msk [vmem:[#allocation5] sm:$0xff] %vm753, %v751
    // Predicated region
    $region14: #{forward.1} parent=1 // pred_check
      _
    $region15: #{forward.1} parent=1 // pred_check_branch
      %756 = sbr.rel (0) target = $region17
    $region16: #{forward.1} parent=1 // pred_region
      %758 = vsyncadd [#allocation4], 0
      %s760 = sshll.u32 [#allocation5], 4
      %s761 = int_to_ptr.vmem [resolvable:$true] %s760
      %s762 = sshll.u32 %s2, 4
      %s763 = int_to_ptr.hbm [resolvable:$true] %s762
      %765 = dma.vmem_to_hbm [thread:$0]  %s761, 128, %s763, [#allocation4]
    $region17: #{forward.1} parent=1 // pred_fallthru
      _
    // Predicated region
    $region18: #{forward.1} parent=1 // pred_check
      _
    $region19: #{forward.1} parent=1 // pred_check_branch
      %767 = sbr.rel (0) target = $region21
    $region20: #{forward.1} parent=1 // pred_region
      %769 = dma.done [#allocation4], 128
    $region21: #{forward.1} parent=1 // pred_fallthru
      _
    %770 = vsyncpa [#allocation3], 1
    %771 = vsyncpa [#allocation4], 1

</llo_original>
